<compile_context>
chip_gen: v6e
topology: v6e:2x2x1
jax: 0.10.0
libtpu: 0.0.40
codegen_flags: <defaults>
</compile_context>

<pallas_src>
import math
import functools

import jax
import jax.numpy as jnp
from jax.experimental import pallas as pl
from jax.experimental.pallas import tpu as pltpu


def _round_up(v, m):
    return (v + m - 1) // m * m


def _cdiv(a, b):
    return -(-a // b)


def _pair(v):
    return (v, v) if isinstance(v, int) else tuple(v)


# Tile sizing: conservative budget that fits even v5e's 16 MiB scoped default;
# explicit limit leaves headroom for the 2-deep BlockSpec pipeline and stays
# within v7x's 64 MiB physical VMEM.
_VMEM_TILE_BUDGET = 12 * 1024 * 1024
_VMEM_LIMIT_BYTES = 64 * 1024 * 1024
_MAX_TILE_LANES = 8192
_STACK_CIN_MAX = 256        # big-K stacking pays while Cin << MXU depth (v6e/v7x)


def _const_index_map(*grid_idx, nd):
    return (0,) * nd


# ----------------------------- Pallas kernel ------------------------------- #

def _lora_conv_kernel(*args, mode, factored, offsets, cin, lt):
    """One grid step == one (image, L-tile) cell.

    mode="direct": x_ref is a (K, Lt) im2col slab -> one big-K dot.
    mode="stack" : x_ref is a (Cin, Lin) flattened row slab; the kh*kw shifted
                   windows are copied into a (K, Lt) VMEM scratch -> one dot.
    mode="loop"  : as "stack" but kh*kw small dots accumulated (large Cin);
                   weights are (kh*kw, ., Cin) and indexed on the leading axis
                   (zero-cost view, no lane-relayout weight slices).
    factored     : z = wa @ x (r, Lt), then out = (wb*scaling) @ z; otherwise a
                   single pre-folded (Cout, K) weight is used.
    """
    if factored:
        x_ref, w1_ref, w2_ref, o_ref, *rest = args
    else:
        x_ref, w1_ref, o_ref, *rest = args
        w2_ref = None

    if mode == "direct":
        z = jnp.dot(w1_ref[...], x_ref[...], preferred_element_type=jnp.float32)
    elif mode == "stack":
        kbuf = rest[0]                                   # (K, Lt) VMEM scratch
        for idx, off in enumerate(offsets):              # static slices
            kbuf[idx * cin:(idx + 1) * cin, :] = x_ref[:, off:off + lt]
        z = jnp.dot(w1_ref[...], kbuf[...], preferred_element_type=jnp.float32)
    else:  # "loop"
        z = jnp.dot(w1_ref[0], x_ref[:, offsets[0]:offsets[0] + lt],
                    preferred_element_type=jnp.float32)
        for idx in range(1, len(offsets)):
            z = z + jnp.dot(w1_ref[idx],
                            x_ref[:, offsets[idx]:offsets[idx] + lt],
                            preferred_element_type=jnp.float32)

    if factored:
        z = jnp.dot(w2_ref[...], z.astype(w2_ref.dtype),
                    preferred_element_type=jnp.float32)
    o_ref[...] = z.astype(o_ref.dtype)


def _lora_conv_pallas(x_in, weights, *, mode, factored, offsets, cin, lt, n_lt,
                      cout, out_dtype, k_total, compute_dtype):
    n = x_in.shape[0]
    kernel = functools.partial(_lora_conv_kernel, mode=mode, factored=factored,
                               offsets=tuple(offsets), cin=cin, lt=lt)

    if mode == "direct":
        k_dim = x_in.shape[1]
        x_spec = pl.BlockSpec((None, k_dim, lt), lambda i, l: (i, 0, l))
    else:
        _, _, cin_dim, lin_t = x_in.shape
        x_spec = pl.BlockSpec((None, None, cin_dim, lin_t),
                              lambda i, l: (i, l, 0, 0))

    w_specs = [pl.BlockSpec(w.shape, functools.partial(_const_index_map, nd=w.ndim))
               for w in weights]
    out_spec = pl.BlockSpec((None, cout, lt), lambda i, l: (i, 0, l))

    scratch = []
    if mode == "stack":
        scratch = [pltpu.VMEM((k_total, lt), compute_dtype)]

    return pl.pallas_call(
        kernel,
        out_shape=jax.ShapeDtypeStruct((n, cout, n_lt * lt), out_dtype),
        grid=(n, n_lt),
        in_specs=[x_spec] + w_specs,
        out_specs=out_spec,
        scratch_shapes=scratch,
        compiler_params=pltpu.CompilerParams(
            dimension_semantics=("parallel", "parallel"),
            vmem_limit_bytes=_VMEM_LIMIT_BYTES),
    )(x_in, *weights)


# ------------------------------ JAX glue ----------------------------------- #

def conv2d_lora_forward(x, wa, wb, *, stride, padding, scaling,
                        compute_dtype=jnp.float32, l_tile_lanes=None,
                        force_factored=None, force_stack=None):
    """x: (N, Cin, H, W); wa: (r, Cin, kh, kw); wb: (Cout, r, 1, 1) -> NCHW out."""
    N, Cin, H, W = x.shape
    r, _, kh, kw = wa.shape
    Cout = wb.shape[0]
    sh, sw = _pair(stride)
    ph, pw = _pair(padding)
    Hp, Wp = H + 2 * ph, W + 2 * pw
    Ho = (Hp - kh) // sh + 1
    Wo = (Wp - kw) // sw + 1
    nwin = kh * kw
    K = nwin * Cin
    xb = jnp.dtype(compute_dtype).itemsize
    out_dtype = compute_dtype
    ob = jnp.dtype(out_dtype).itemsize

    # Shape-dependent fold-vs-factored (FLOPs/pixel: 2*r*(K+Cout) vs 2*Cout*K).
    factored = r * (K + Cout) < Cout * K
    if force_factored is not None:
        factored = bool(force_factored)

    # Weight prep in f32; K ordered (di, dj, c) with c fastest everywhere.
    wa_k = jnp.transpose(wa, (0, 2, 3, 1)).reshape(r, K).astype(jnp.float32)
    wb_s = wb.reshape(Cout, r).astype(jnp.float32) * scaling   # scaling folded here

    fused = (sh == 1 and sw == 1 and Wp >= 128)

    if fused:
        # Fused stride-1 path: stream the padded image; rows padded to a
        # 128-lane multiple so the kh row offsets (di*Wpp) are lane-aligned.
        Wpp = _round_up(Wp, 128)
        stack = Cin < _STACK_CIN_MAX
        if force_stack is not None:
            stack = bool(force_stack)
        mode = "stack" if stack else "loop"

        per_lane = (4 * Cin * xb + 2 * Cout * ob
                    + (K * xb if stack else 0)
                    + 4 * (r if factored else Cout) + 64)
        if l_tile_lanes is not None:
            lanes = _round_up(int(l_tile_lanes), 128)
        else:
            lanes = max(128, min(_MAX_TILE_LANES,
                                 _VMEM_TILE_BUDGET // per_lane // 128 * 128))
        ho_t = min(Ho, max(1, lanes // Wpp))        # output rows per L-tile
        n_lt = _cdiv(Ho, ho_t)
        rows_t = ho_t + kh - 1                      # input rows per tile (halo)
        lt = ho_t * Wpp                             # lane-dense, multiple of 128

        xp = jnp.pad(x, ((0, 0), (0, 0), (ph, ph), (pw, pw + Wpp - Wp)))
        Hp_need = n_lt * ho_t + kh - 1
        xp = jnp.pad(xp, ((0, 0), (0, 0), (0, Hp_need - Hp), (0, 0)))
        row_idx = jnp.arange(n_lt)[:, None] * ho_t + jnp.arange(rows_t)[None, :]
        x_tiles = xp[:, :, row_idx, :]                       # (N,Cin,n_lt,rows_t,Wpp)
        x_tiles = jnp.transpose(x_tiles, (0, 2, 1, 3, 4))
        x_tiles = x_tiles.reshape(N, n_lt, Cin, rows_t * Wpp)
        # +128 zero lanes: the (kh-1, kw-1) window over-reaches the slab by kw-1.
        x_in = jnp.pad(x_tiles, ((0, 0), (0, 0), (0, 0), (0, 128)))

        offsets = tuple(di * Wpp + dj for di in range(kh) for dj in range(kw))
        cin_eff = Cin
        if mode == "stack":
            w1 = wa_k if factored else (wb_s @ wa_k)                 # (r,K)/(Cout,K)
        else:
            base = wa_k if factored else (wb_s @ wa_k)
            rows = r if factored else Cout
            w1 = jnp.transpose(base.reshape(rows, nwin, Cin), (1, 0, 2))
    else:
        # im2col path (general stride / small feature maps): windows laid on the
        # contraction axis in the wrapper -> single big-K dot, aligned views.
        mode = "direct"
        xp = jnp.pad(x, ((0, 0), (0, 0), (ph, ph), (pw, pw)))
        pieces = [xp[:, :, di:di + Ho * sh:sh, dj:dj + Wo * sw:sw]
                  for di in range(kh) for dj in range(kw)]   # each (N,Cin,Ho,Wo)
        x_k = jnp.stack(pieces, axis=1).reshape(N, K, Ho * Wo)

        L = Ho * Wo
        per_lane = (2 * K * xb + 2 * Cout * ob
                    + 4 * (r if factored else Cout) + 64)
        if l_tile_lanes is not None:
            lt = _round_up(int(l_tile_lanes), 128)
        else:
            lt = max(128, min(_MAX_TILE_LANES,
                              _VMEM_TILE_BUDGET // per_lane // 128 * 128))
        lt = min(lt, _round_up(L, 128))
        n_lt = _cdiv(L, lt)
        x_in = jnp.pad(x_k, ((0, 0), (0, 0), (0, n_lt * lt - L)))
        offsets = (0,)
        cin_eff = K
        w1 = wa_k if factored else (wb_s @ wa_k)

    weights = [w1.astype(compute_dtype)]
    if factored:
        weights.append(wb_s.astype(compute_dtype))
    x_in = x_in.astype(compute_dtype)

    out_flat = _lora_conv_pallas(
        x_in, weights, mode=mode, factored=factored, offsets=offsets,
        cin=cin_eff, lt=lt, n_lt=n_lt, cout=Cout, out_dtype=out_dtype,
        k_total=K, compute_dtype=compute_dtype)

    if fused:
        Wpp = _round_up(Wp, 128)
        out = out_flat.reshape(N, Cout, n_lt * (lt // Wpp), Wpp)[:, :, :Ho, :Wo]
    else:
        out = out_flat[:, :, :Ho * Wo].reshape(N, Cout, Ho, Wo)
    return out


# --------------------------- Parameter init -------------------------------- #

def init_params(key, r, in_features, out_features, kernel_size):
    kh, kw = _pair(kernel_size)
    fan_in = in_features * kh * kw
    bound = 1.0 / math.sqrt(fan_in)          # kaiming_uniform_(a=sqrt(5))
    wa = jax.random.uniform(key, (r, in_features, kh, kw),
                            minval=-bound, maxval=bound, dtype=jnp.float32)
    wb = jnp.zeros((out_features, r, 1, 1), dtype=jnp.float32)   # nn.init.zeros_
    return wa, wb


# ------------------------------ Main --------------------------------------- #

if __name__ == "__main__":
    r, in_features, out_features = 4, 4, 8
    lora_alpha = 8
    scaling = lora_alpha / r

    key = jax.random.PRNGKey(0)
    kx, kw_, kb, kx2 = jax.random.split(key, 4)
    x = jax.random.normal(kx, (2, in_features, 16, 16), dtype=jnp.float32)
    wa, wb0 = init_params(kw_, r, in_features, out_features, 3)
    wb_nz = jax.random.normal(kb, (out_features, r, 1, 1), dtype=jnp.float32)

    def ref(x, wa, wb, s, p):
        a = jax.lax.conv_general_dilated(
            x, wa, (s, s), [(p, p)] * 2,
            dimension_numbers=("NCHW", "OIHW", "NCHW"))
        b = jax.lax.conv_general_dilated(
            a, wb, (1, 1), [(0, 0), (0, 0)],
            dimension_numbers=("NCHW", "OIHW", "NCHW"))
        return b * scaling

    def check(y, yref, atol=1e-4):
        assert y.shape == yref.shape, (y.shape, yref.shape)
        assert jnp.allclose(y.astype(jnp.float32), yref, atol=atol, rtol=1e-3), \
            float(jnp.max(jnp.abs(y.astype(jnp.float32) - yref)))

    def run(*a, **k):
        return jax.block_until_ready(conv2d_lora_forward(*a, **k))

    # 1) real init (zero lora_B) -- im2col path, auto-factored
    y = run(x, wa, wb0, stride=1, padding=1, scaling=scaling)
    check(y, ref(x, wa, wb0, 1, 1))

    # 2) non-zero lora_B
    yr = ref(x, wa, wb_nz, 1, 1)
    y = run(x, wa, wb_nz, stride=1, padding=1, scaling=scaling)
    check(y, yr)

    # 3) multiple L-tiles on the im2col path
    y = run(x, wa, wb_nz, stride=1, padding=1, scaling=scaling, l_tile_lanes=128)
    check(y, yr)

    # 4) pre-folded weight path
    y = run(x, wa, wb_nz, stride=1, padding=1, scaling=scaling,
            force_factored=False)
    check(y, yr)

    # 5) general-stride fallback
    y = run(x, wa, wb_nz, stride=2, padding=1, scaling=scaling)
    check(y, ref(x, wa, wb_nz, 2, 1))

    # 6) fused stride-1 path (wide rows): stacked big-K + factored, 4 L-tiles
    xw = jax.random.normal(kx2, (2, in_features, 8, 140), dtype=jnp.float32)
    yrw = ref(xw, wa, wb_nz, 1, 1)
    y = run(xw, wa, wb_nz, stride=1, padding=1, scaling=scaling, l_tile_lanes=512)
    check(y, yrw)

    # 7) fused path, loop-accumulate variants (factored and folded)
    y = run(xw, wa, wb_nz, stride=1, padding=1, scaling=scaling,
            l_tile_lanes=512, force_stack=False)
    check(y, yrw)
    y = run(xw, wa, wb_nz, stride=1, padding=1, scaling=scaling,
            l_tile_lanes=512, force_stack=False, force_factored=False)
    check(y, yrw)

    # 8) bf16 data path (f32 MXU accumulation, bf16 output) -- loose tolerance
    y = run(xw, wa, wb_nz, stride=1, padding=1, scaling=scaling,
            compute_dtype=jnp.bfloat16)
    assert jnp.allclose(y.astype(jnp.float32), yrw, rtol=5e-2, atol=2e-1)

    print("KERNEL_OK")
</pallas_src>

<mosaic_0001>
module attributes {stable_mosaic.version = 11 : i64} {
  func.func @_lora_conv_kernel(%arg0: i32, %arg1: i32, %arg2: memref<1x36x256xf32, #tpu.memory_space<vmem>>, %arg3: memref<4x36xf32, #tpu.memory_space<vmem>>, %arg4: memref<8x4xf32, #tpu.memory_space<vmem>>, %arg5: memref<1x8x256xf32, #tpu.memory_space<vmem>>) attributes {dimension_semantics = [#tpu.dimension_semantics<parallel>, #tpu.dimension_semantics<parallel>], iteration_bounds = array<i64: 2, 1>, scalar_prefetch = 0 : i64, scratch_operands = 0 : i64, tpu.core_type = #tpu.core_type<tc>, window_params = [{transform_indices = @transform_0, window_bounds = array<i64: 1, 36, 256>}, {pipeline_mode = #tpu.pipeline_mode<synchronous>, transform_indices = @transform_1, window_bounds = array<i64: 4, 36>}, {pipeline_mode = #tpu.pipeline_mode<synchronous>, transform_indices = @transform_2, window_bounds = array<i64: 8, 4>}, {transform_indices = @transform_3, window_bounds = array<i64: 1, 8, 256>}]} {
    %c0 = arith.constant 0 : index
    %c0_0 = arith.constant 0 : index
    %0 = vector.load %arg3[%c0, %c0_0] : memref<4x36xf32, #tpu.memory_space<vmem>>, vector<4x36xf32>
    %c0_1 = arith.constant 0 : index
    %c0_2 = arith.constant 0 : index
    %c0_3 = arith.constant 0 : index
    %1 = vector.load %arg2[%c0_1, %c0_2, %c0_3] : memref<1x36x256xf32, #tpu.memory_space<vmem>>, vector<1x36x256xf32>
    %2 = vector.shape_cast %1 : vector<1x36x256xf32> to vector<36x256xf32>
    %cst = arith.constant dense<0.000000e+00> : vector<4x256xf32>
    %3 = tpu.matmul %0, %2, %cst {dimension_numbers = #tpu.dot_dimension_numbers<[1], [0], [0], [1], [0, 0, 1, 1], [], []>} : vector<4x36xf32>, vector<36x256xf32>, vector<4x256xf32> -> vector<4x256xf32>
    %c0_4 = arith.constant 0 : index
    %c0_5 = arith.constant 0 : index
    %4 = vector.load %arg4[%c0_4, %c0_5] : memref<8x4xf32, #tpu.memory_space<vmem>>, vector<8x4xf32>
    %cst_6 = arith.constant dense<0.000000e+00> : vector<8x256xf32>
    %5 = tpu.matmul %4, %3, %cst_6 {dimension_numbers = #tpu.dot_dimension_numbers<[1], [0], [0], [1], [0, 0, 1, 1], [], []>} : vector<8x4xf32>, vector<4x256xf32>, vector<8x256xf32> -> vector<8x256xf32>
    %c0_7 = arith.constant 0 : index
    %c0_8 = arith.constant 0 : index
    %c0_9 = arith.constant 0 : index
    %6 = vector.load %arg5[%c0_7, %c0_8, %c0_9] : memref<1x8x256xf32, #tpu.memory_space<vmem>>, vector<1x8x256xf32>
    %7 = vector.shape_cast %6 : vector<1x8x256xf32> to vector<8x256xf32>
    %8 = vector.shape_cast %5 : vector<8x256xf32> to vector<1x8x256xf32>
    tpu.vector_store %arg5[%c0_7, %c0_8, %c0_9], %8 {strides = array<i32>} : memref<1x8x256xf32, #tpu.memory_space<vmem>>, vector<1x8x256xf32>,
    return
  }
  func.func @transform_0(%arg0: i32, %arg1: i32) -> (i32, i32, i32) {
    %c0_i32 = arith.constant 0 : i32
    %c0_i32_0 = arith.constant 0 : i32
    return %arg0, %c0_i32, %arg1 : i32, i32, i32
  }
  func.func @transform_1(%arg0: i32, %arg1: i32) -> (i32, i32) {
    %c0_i32 = arith.constant 0 : i32
    %c0_i32_0 = arith.constant 0 : i32
    %c0_i32_1 = arith.constant 0 : i32
    return %c0_i32, %c0_i32_0 : i32, i32
  }
  func.func @transform_2(%arg0: i32, %arg1: i32) -> (i32, i32) {
    %c0_i32 = arith.constant 0 : i32
    %c0_i32_0 = arith.constant 0 : i32
    %c0_i32_1 = arith.constant 0 : i32
    return %c0_i32, %c0_i32_0 : i32, i32
  }
  func.func @transform_3(%arg0: i32, %arg1: i32) -> (i32, i32, i32) {
    %c0_i32 = arith.constant 0 : i32
    %c0_i32_0 = arith.constant 0 : i32
    return %arg0, %c0_i32, %arg1 : i32, i32, i32
  }
}

</mosaic_0001>

<llo_original>
// kernel: tpu_custom_call.1
$region0: #{tpu_custom_call.1}
  #allocation0 [shape = 'u32[]', space=smem, size = 0x4, offset = 0x4, fixed_abs, tag = 'smem constant byte address 0x4 - core index']
  #allocation1 [shape = 'u32[144,128]{1,0:T(1,128)}', space=vmem, size = 0x12000, scoped, tag = 'internal scratch']
  %s0 = inlined_call_operand.vmem [shape: f32[2,36,256], index: 0, kind: input, shape index: {}]
  %s1 = inlined_call_operand.vmem [shape: f32[4,36], index: 1, kind: input, shape index: {}]
  %s2 = inlined_call_operand.vmem [shape: f32[8,4], index: 2, kind: input, shape index: {}]
  %s3 = inlined_call_operand.hbm [shape: f32[2,8,256], index: 3, kind: output, shape index: {}]
  %s4 = sld [smem:[#allocation0]]
  $region45: #{tpu_custom_call.1} parent=0
    _
  %s6 = ssub.s32 1, %s4
  %s7 = scalar_select 0, %s6, %s4
  $region1: #{tpu_custom_call.1} parent=0
    #allocation2 [shape = 'u8[16384]{0}', space=vmem, size = 0x4000, scoped, tag = 'output window, operand 0']
    #allocation3 [shape = 's32[2]{0}', space=sflag, size = 0x8, scoped, tag = 'scoped memory for tpu_custom_call.1']
    %8 = vsyncpa [#allocation3], 0
    %s9 = scalar_lea.sflag [#allocation3], 1
    %10 = vsyncpa %s9, 0
    loop: start=0, step=1, limit=4
    $region2: #{tpu_custom_call.1} parent=1 // loop_pre_header
      _
    $region3: #{tpu_custom_call.1} parent=1 // loop_header
      %s12 = sphi 0, %s16
      %p13 = scmp.ge.s32.totalorder %s12, 4
      %s19 = sphi 0, %s31
      %s20 = sphi 0, %s27
      %s21 = sphi 0, %s19
      %s22 = sphi 0, %s20
      %s23 = sphi 0, %s21
      %s24 = sphi 0, %s22
      %s36 = sphi 0, %s38
      %s39 = sphi 0, %s36
      %s40 = sphi 0, %s39
      %s56 = sphi 0, %s40
      %s60 = sphi 0, %s60
      %s62 = sphi 0, %s60
      %s63 = sphi 0, %s62
      %s77 = sphi 0, %s63
      %s81 = sphi 0, %s81
      %s83 = sphi 0, %s81
      %s84 = sphi 0, %s83
      %s98 = sphi 0, %s84
      %s106 = sphi 0, %s108
      %s109 = sphi 0, %s106
      %s110 = sphi 0, %s109
      %s126 = sphi 0, %s110
    $region4: #{tpu_custom_call.1} parent=1 // loop_header_branch
      %15 = sbr.rel (%p13) target = $region8
    $region5: #{tpu_custom_call.1} parent=1 // loop_body
      %s17 = ssub.s32 %s12, 1
      %s18 = ssub.s32 %s12, 2
      %s25 = sadd.s32 1, %s20
      %p26 = scmp.ge.s32.totalorder %s25, 1
      %s27 = scalar_select %p26, 0, %s25
      %s28 = sadd.s32 1, %s19
      %s29 = scalar_select %p26, %s28, %s19
      %p30 = scmp.ge.s32.totalorder %s29, 2
      %s31 = scalar_select %p30, 0, %s29
      %s32 = ssub.s32 %s19, %s31
      %s33 = ssub.s32 %s20, %s27
      %s34 = sor.u32 %s32, %s33
      %p35 = scmp.eq.s32.totalorder %s34, 0
      %s37 = sadd.s32 %s36, 1
      %s38 = scalar_select %p35, %s36, %s37
      %p41 = pneg %p35
      %p42 = scmp.eq.s32.totalorder %s12, 1
      %p43 = por %p41, %p42
      %p44 = scmp.ne.s32.totalorder %s36, %s39
      %p45 = scmp.eq.s32.totalorder %s12, 0
      %p46 = por %p44, %p45
      %p47 = scmp.ne.s32.totalorder %s36, %s39
      %p48 = scmp.eq.s32.totalorder %s17, 1
      %p49 = por %p47, %p48
      %p50 = scmp.ne.s32.totalorder %s39, %s40
      %p51 = scmp.eq.s32.totalorder %s17, 0
      %p52 = por %p50, %p51
      %p53 = scmp.ne.s32.totalorder %s39, %s40
      %p54 = scmp.eq.s32.totalorder %s18, 1
      %p55 = por %p53, %p54
      %p57 = scmp.ne.s32.totalorder %s40, %s56
      %p58 = scmp.eq.s32.totalorder %s18, 0
      %p59 = por %p57, %p58
      %s61 = sadd.s32 %s60, 1
      %p64 = scmp.eq.s32.totalorder %s12, 1
      %p65 = scmp.ne.s32.totalorder %s60, %s62
      %p66 = scmp.eq.s32.totalorder %s12, 0
      %p67 = por %p65, %p66
      %p68 = scmp.ne.s32.totalorder %s60, %s62
      %p69 = scmp.eq.s32.totalorder %s17, 1
      %p70 = por %p68, %p69
      %p71 = scmp.ne.s32.totalorder %s62, %s63
      %p72 = scmp.eq.s32.totalorder %s17, 0
      %p73 = por %p71, %p72
      %p74 = scmp.ne.s32.totalorder %s62, %s63
      %p75 = scmp.eq.s32.totalorder %s18, 1
      %p76 = por %p74, %p75
      %p78 = scmp.ne.s32.totalorder %s63, %s77
      %p79 = scmp.eq.s32.totalorder %s18, 0
      %p80 = por %p78, %p79
      %s82 = sadd.s32 %s81, 1
      %p85 = scmp.eq.s32.totalorder %s12, 1
      %p86 = scmp.ne.s32.totalorder %s81, %s83
      %p87 = scmp.eq.s32.totalorder %s12, 0
      %p88 = por %p86, %p87
      %p89 = scmp.ne.s32.totalorder %s81, %s83
      %p90 = scmp.eq.s32.totalorder %s17, 1
      %p91 = por %p89, %p90
      %p92 = scmp.ne.s32.totalorder %s83, %s84
      %p93 = scmp.eq.s32.totalorder %s17, 0
      %p94 = por %p92, %p93
      %p95 = scmp.ne.s32.totalorder %s83, %s84
      %p96 = scmp.eq.s32.totalorder %s18, 1
      %p97 = por %p95, %p96
      %p99 = scmp.ne.s32.totalorder %s84, %s98
      %p100 = scmp.eq.s32.totalorder %s18, 0
      %p101 = por %p99, %p100
      %s102 = ssub.s32 %s19, %s31
      %s103 = ssub.s32 %s20, %s27
      %s104 = sor.u32 %s102, %s103
      %p105 = scmp.eq.s32.totalorder %s104, 0
      %s107 = sadd.s32 %s106, 1
      %s108 = scalar_select %p105, %s106, %s107
      %p111 = pneg %p105
      %p112 = scmp.eq.s32.totalorder %s12, 1
      %p113 = por %p111, %p112
      %p114 = scmp.ne.s32.totalorder %s106, %s109
      %p115 = scmp.eq.s32.totalorder %s12, 0
      %p116 = por %p114, %p115
      %p117 = scmp.ne.s32.totalorder %s106, %s109
      %p118 = scmp.eq.s32.totalorder %s17, 1
      %p119 = por %p117, %p118
      %p120 = scmp.ne.s32.totalorder %s109, %s110
      %p121 = scmp.eq.s32.totalorder %s17, 0
      %p122 = por %p120, %p121
      %p123 = scmp.ne.s32.totalorder %s109, %s110
      %p124 = scmp.eq.s32.totalorder %s18, 1
      %p125 = por %p123, %p124
      %p127 = scmp.ne.s32.totalorder %s110, %s126
      %p128 = scmp.eq.s32.totalorder %s18, 0
      %p129 = por %p127, %p128
      %p130 = scmp.le.s32.totalorder 1, %s12
      %p131 = scmp.lt.s32.totalorder %s12, 3
      %p132 = pnand %p130, %p131
      %p133 = pneg %p132
      // Predicated region
      $region9: #{tpu_custom_call.1} parent=5 // pred_check
        _
      $region10: #{tpu_custom_call.1} parent=5 // pred_check_branch
        %135 = sbr.rel (%p132) target = $region12
      $region11: #{tpu_custom_call.1} parent=5 // pred_region
        %s136 = ssub.s32 %s12, 1
        // Predicated region
        $region13: #{tpu_custom_call.1} parent=11 // pred_check
          %p137 = pneg %p73
        $region14: #{tpu_custom_call.1} parent=11 // pred_check_branch
          %139 = sbr.rel (%p137) target = $region16
        $region15: #{tpu_custom_call.1} parent=11 // pred_region
          _
        $region16: #{tpu_custom_call.1} parent=11 // pred_fallthru
          _
        // Predicated region
        $region17: #{tpu_custom_call.1} parent=11 // pred_check
          %p140 = pneg %p94
        $region18: #{tpu_custom_call.1} parent=11 // pred_check_branch
          %142 = sbr.rel (%p140) target = $region20
        $region19: #{tpu_custom_call.1} parent=11 // pred_region
          _
        $region20: #{tpu_custom_call.1} parent=11 // pred_fallthru
          _
      $region12: #{tpu_custom_call.1} parent=5 // pred_fallthru
        _
      %p143 = scmp.lt.s32.totalorder %s12, 2
      // Predicated region
      $region21: #{tpu_custom_call.1} parent=5 // pred_check
        %p144 = pneg %p143
      $region22: #{tpu_custom_call.1} parent=5 // pred_check_branch
        %146 = sbr.rel (%p144) target = $region24
      $region23: #{tpu_custom_call.1} parent=5 // pred_region
        // Predicated region
        $region25: #{tpu_custom_call.1} parent=23 // pred_check
          %p147 = pneg %p46
        $region26: #{tpu_custom_call.1} parent=23 // pred_check_branch
          %149 = sbr.rel (%p147) target = $region28
        $region27: #{tpu_custom_call.1} parent=23 // pred_region
          %s150 = smul.u32 2, %s20
          %p151 = scmp.lt.s32.totalorder %s19, 1
          %s152 = scalar_select %p151, %s19, 1
          %p153 = scmp.lt.s32.totalorder %s150, 1
          %s154 = scalar_select %p153, %s150, 1
          %s155 = smul.addr %s152, 10
          %s156 = sadd.s32 %s154, %s155
          %s157 = smul.addr %s156, 8
          %s158 = scalar_lea.vmem %s0, %s157
          %s159 = smul.u32 2, %s20
        $region28: #{tpu_custom_call.1} parent=23 // pred_fallthru
          _
      $region24: #{tpu_custom_call.1} parent=5 // pred_fallthru
        _
      %p160 = scmp.le.s32.totalorder 1, %s12
      %p161 = scmp.lt.s32.totalorder %s12, 3
      %p162 = pnand %p160, %p161
      %p163 = pneg %p162
      // Predicated region
      $region29: #{tpu_custom_call.1} parent=5 // pred_check
        _
      $region30: #{tpu_custom_call.1} parent=5 // pred_check_branch
        %165 = sbr.rel (%p162) target = $region32
      $region31: #{tpu_custom_call.1} parent=5 // pred_region
        %s166 = ssub.s32 %s12, 1
        %s167 = smul.u32 2, %s22
        %p168 = scmp.lt.s32.totalorder %s21, 1
        %s169 = scalar_select %p168, %s21, 1
        %p170 = scmp.lt.s32.totalorder %s167, 1
        %s171 = scalar_select %p170, %s167, 1
        %s172 = smul.addr %s169, 10
        %s173 = sadd.s32 %s171, %s172
        %s174 = smul.addr %s173, 8
        %s175 = scalar_lea.vmem %s0, %s174
        %p176 = pneg %p52
        %p177 = pneg %p49
        %p178 = pneg %p73
        %p179 = pneg %p70
        %p180 = pneg %p94
        %p181 = pneg %p91
        %p182 = pneg %p122
        %p183 = pneg %p119
        %s184 = sand.u32 %s109, 1
        %s185 = scalar_lea.sflag [#allocation3], %s184
        %s186 = sand.u32 %s109, 1
        %s187 = smul.addr %s186, 16
        %s188 = scalar_lea.vmem [#allocation2], %s187
        %s189 = smul.u32 2, %s22
        %p190 = scmp.lt.s32.totalorder %s21, 1
        %s191 = scalar_select %p190, %s21, 1
        %p192 = scmp.lt.s32.totalorder %s189, 1
        %s193 = scalar_select %p192, %s189, 1
        %s194 = smul.addr %s191, 10
        %s195 = sadd.s32 %s193, %s194
        %s196 = smul.addr %s195, 8
        %s197 = scalar_lea.vmem %s0, %s196
        %s198 = smul.u32 2, %s22
        %s199 = smul.u32 2, %s22
        %v200 = vld [vmem:[%s1] sm:$0xf]
        %v201 = vld [vmem:[%s197] sm:$0xff]
        %v202 = vld [vmem:[%s197 + $0x8] sm:$0xff]
        %v203 = vld [vmem:[%s197 + $0x10] sm:$0xff]
        %v204 = vld [vmem:[%s197 + $0x18] sm:$0xff]
        %v205 = vld [vmem:[%s197 + $0x20] sm:$0xff]
        %v206 = vld [vmem:[%s197 + $0x28] sm:$0xff]
        %v207 = vld [vmem:[%s197 + $0x30] sm:$0xff]
        %v208 = vld [vmem:[%s197 + $0x38] sm:$0xff]
        %v209 = vld [vmem:[%s197 + $0x40] sm:$0xf]
        %v210 = vld [vmem:[%s197 + $0x48] sm:$0xf]
        %vm211 = vcmask 293888
        %v213 = vsel %vm211, %v200, 0
        %vm215 = vcmask 1043456
        %v217 = vsel %vm215, %v209, 0
        %v220 = vsel %vm215, %v210, 0
        %222 = vmatprep.subr.mxu0 0.0
        %223 = vmatpush1.msra.mxu0 0.0
        %224 = vmatprep.subr.mxu0 0.0
        %225 = vmatpush1.msra.mxu0 0.0
        %226 = vmatprep.subr.mxu0 0.0
        %227 = vmatpush1.msra.mxu0 0.0
        %228 = vmatprep.subr.mxu0 0.0
        %229 = vmatpush1.msra.mxu0 0.0
        %230 = vmatprep.subr.mxu0 0.0
        %231 = vmatpush1.msra.mxu0 0.0
        %232 = vmatprep.subr.mxu0 0.0
        %233 = vmatpush1.msra.mxu0 0.0
        %234 = vmatprep.subr.mxu0 0.0
        %235 = vmatpush1.msra.mxu0 0.0
        %236 = vmatprep.subr.mxu0 0.0
        %237 = vmatpush1.msra.mxu0 0.0
        %238 = vmatprep.subr.mxu0 0.0
        %239 = vmatpush1.msra.mxu0 0.0
        %240 = vmatprep.subr.mxu0 0.0
        %241 = vmatpush1.msra.mxu0 0.0
        %242 = vmatprep.subr.mxu0 0.0
        %243 = vmatpush1.msra.mxu0 0.0
        %244 = vmatprep.subr.mxu0 %v220
        %245 = vmatpush1.msra.mxu0 %v217
        %246 = vmatprep.subr.mxu0 %v208
        %247 = vmatpush1.msra.mxu0 %v207
        %248 = vmatprep.subr.mxu0 %v206
        %249 = vmatpush1.msra.mxu0 %v205
        %250 = vmatprep.subr.mxu0 %v204
        %251 = vmatpush1.msra.mxu0 %v203
        %252 = vmatprep.subr.mxu0 %v202
        %253 = vmatpush1.msra.mxu0 %v201
        %254 = vmatprep.subr.mxu0 0.0
        %255 = vmatpush2.msra.mxu0 0.0
        %256 = vmatprep.subr.mxu0 0.0
        %257 = vmatpush2.msra.mxu0 0.0
        %258 = vmatprep.subr.mxu0 0.0
        %259 = vmatpush2.msra.mxu0 0.0
        %260 = vmatprep.subr.mxu0 0.0
        %261 = vmatpush2.msra.mxu0 0.0
        %262 = vmatprep.subr.mxu0 0.0
        %263 = vmatpush2.msra.mxu0 0.0
        %264 = vmatprep.subr.mxu0 0.0
        %265 = vmatpush2.msra.mxu0 0.0
        %266 = vmatprep.subr.mxu0 0.0
        %267 = vmatpush2.msra.mxu0 0.0
        %268 = vmatprep.subr.mxu0 0.0
        %269 = vmatpush2.msra.mxu0 0.0
        %270 = vmatprep.subr.mxu0 0.0
        %271 = vmatpush2.msra.mxu0 0.0
        %272 = vmatprep.subr.mxu0 0.0
        %273 = vmatpush2.msra.mxu0 0.0
        %274 = vmatprep.subr.mxu0 0.0
        %275 = vmatpush2.msra.mxu0 0.0
        %276 = vmatprep.subr.mxu0 0.0
        %277 = vmatpush2.msra.mxu0 0.0
        %278 = vmatprep.subr.mxu0 0.0
        %279 = vmatpush2.msra.mxu0 0.0
        %280 = vmatprep.subr.mxu0 0.0
        %281 = vmatpush2.msra.mxu0 0.0
        %282 = vmatprep.subr.mxu0 0.0
        %283 = vmatpush2.msra.mxu0 0.0
        %284 = vmatprep.subr.mxu0 0.0
        %285 = vmatpush2.msra.mxu0 0.0
        %286 = vmatprep.mubr.f32.mxu0 0.0
        %287 = vmatmul.mubr.f32.gmra.mxu0 %v213
        %v288 = vpop.f32.mrf.mxu0
        %v289 = vadd.f32 0.0, %v288
        %v290 = vpop.f32.mrf.mxu0
        %v291 = vadd.f32 0.0, %v290
        %292 = vdwg.mxu0
        %v293 = vld [vmem:[%s2] sm:$0xff]
        %vm294 = vcmask 31744
        %v296 = vsel %vm294, %v293, 0
        %v299 = vsel %vm215, %v289, 0
        %v302 = vsel %vm215, %v291, 0
        %304 = vmatprep.subr.mxu0 0.0
        %305 = vmatpush1.msra.mxu0 0.0
        %306 = vmatprep.subr.mxu0 0.0
        %307 = vmatpush1.msra.mxu0 0.0
        %308 = vmatprep.subr.mxu0 0.0
        %309 = vmatpush1.msra.mxu0 0.0
        %310 = vmatprep.subr.mxu0 0.0
        %311 = vmatpush1.msra.mxu0 0.0
        %312 = vmatprep.subr.mxu0 0.0
        %313 = vmatpush1.msra.mxu0 0.0
        %314 = vmatprep.subr.mxu0 0.0
        %315 = vmatpush1.msra.mxu0 0.0
        %316 = vmatprep.subr.mxu0 0.0
        %317 = vmatpush1.msra.mxu0 0.0
        %318 = vmatprep.subr.mxu0 0.0
        %319 = vmatpush1.msra.mxu0 0.0
        %320 = vmatprep.subr.mxu0 0.0
        %321 = vmatpush1.msra.mxu0 0.0
        %322 = vmatprep.subr.mxu0 0.0
        %323 = vmatpush1.msra.mxu0 0.0
        %324 = vmatprep.subr.mxu0 0.0
        %325 = vmatpush1.msra.mxu0 0.0
        %326 = vmatprep.subr.mxu0 0.0
        %327 = vmatpush1.msra.mxu0 0.0
        %328 = vmatprep.subr.mxu0 0.0
        %329 = vmatpush1.msra.mxu0 0.0
        %330 = vmatprep.subr.mxu0 0.0
        %331 = vmatpush1.msra.mxu0 0.0
        %332 = vmatprep.subr.mxu0 0.0
        %333 = vmatpush1.msra.mxu0 0.0
        %334 = vmatprep.subr.mxu0 %v302
        %335 = vmatpush1.msra.mxu0 %v299
        %336 = vmatprep.subr.mxu0 0.0
        %337 = vmatpush2.msra.mxu0 0.0
        %338 = vmatprep.subr.mxu0 0.0
        %339 = vmatpush2.msra.mxu0 0.0
        %340 = vmatprep.subr.mxu0 0.0
        %341 = vmatpush2.msra.mxu0 0.0
        %342 = vmatprep.subr.mxu0 0.0
        %343 = vmatpush2.msra.mxu0 0.0
        %344 = vmatprep.subr.mxu0 0.0
        %345 = vmatpush2.msra.mxu0 0.0
        %346 = vmatprep.subr.mxu0 0.0
        %347 = vmatpush2.msra.mxu0 0.0
        %348 = vmatprep.subr.mxu0 0.0
        %349 = vmatpush2.msra.mxu0 0.0
        %350 = vmatprep.subr.mxu0 0.0
        %351 = vmatpush2.msra.mxu0 0.0
        %352 = vmatprep.subr.mxu0 0.0
        %353 = vmatpush2.msra.mxu0 0.0
        %354 = vmatprep.subr.mxu0 0.0
        %355 = vmatpush2.msra.mxu0 0.0
        %356 = vmatprep.subr.mxu0 0.0
        %357 = vmatpush2.msra.mxu0 0.0
        %358 = vmatprep.subr.mxu0 0.0
        %359 = vmatpush2.msra.mxu0 0.0
        %360 = vmatprep.subr.mxu0 0.0
        %361 = vmatpush2.msra.mxu0 0.0
        %362 = vmatprep.subr.mxu0 0.0
        %363 = vmatpush2.msra.mxu0 0.0
        %364 = vmatprep.subr.mxu0 0.0
        %365 = vmatpush2.msra.mxu0 0.0
        %366 = vmatprep.subr.mxu0 0.0
        %367 = vmatpush2.msra.mxu0 0.0
        %368 = vmatprep.mubr.f32.mxu0 0.0
        %369 = vmatmul.mubr.f32.gmra.mxu0 %v296
        %v370 = vpop.f32.mrf.mxu0
        %v371 = vadd.f32 0.0, %v370
        %v372 = vpop.f32.mrf.mxu0
        %v373 = vadd.f32 0.0, %v372
        %374 = vdwg.mxu0
        %375 = vst [vmem:[%s188] sm:$0xff] %v371
        %376 = vst [vmem:[%s188 + $0x8] sm:$0xff] %v373
        %s377 = sand.u32 %s109, 1
        %s378 = scalar_lea.sflag [#allocation3], %s377
        %s379 = sand.u32 %s109, 1
        %s380 = smul.addr %s379, 16
        %s381 = scalar_lea.vmem [#allocation2], %s380
        // Predicated region
        $region33: #{tpu_custom_call.1} parent=31 // pred_check
          %p382 = pneg %p119
        $region34: #{tpu_custom_call.1} parent=31 // pred_check_branch
          %384 = sbr.rel (%p382) target = $region36
        $region35: #{tpu_custom_call.1} parent=31 // pred_region
          %s385 = smul.u32 2, %s22
          %s387 = ssub.s32 256, 256
          %388 = vsyncadd %s378, %s387
          %s389 = smul.addr %s21, 2
          %s390 = sadd.s32 %s385, %s389
          %s391 = smul.addr %s390, 128
          %s392 = scalar_lea.hbm %s3, %s391
          %s394 = sshll.u32 %s381, 4
          %s395 = int_to_ptr.vmem [resolvable:$true] %s394
          %397 = dma.vmem_to_hbm [thread:$0]  %s395, 256, %s392, %s378
        $region36: #{tpu_custom_call.1} parent=31 // pred_fallthru
          _
      $region32: #{tpu_custom_call.1} parent=5 // pred_fallthru
        _
      %p398 = scmp.le.s32.totalorder 2, %s12
      // Predicated region
      $region37: #{tpu_custom_call.1} parent=5 // pred_check
        %p399 = pneg %p398
      $region38: #{tpu_custom_call.1} parent=5 // pred_check_branch
        %401 = sbr.rel (%p399) target = $region40
      $region39: #{tpu_custom_call.1} parent=5 // pred_region
        %s402 = ssub.s32 %s12, 2
        // Predicated region
        $region41: #{tpu_custom_call.1} parent=39 // pred_check
          %p403 = pneg %p125
        $region42: #{tpu_custom_call.1} parent=39 // pred_check_branch
          %405 = sbr.rel (%p403) target = $region44
        $region43: #{tpu_custom_call.1} parent=39 // pred_region
          %s406 = sand.u32 %s110, 1
          %s407 = scalar_lea.sflag [#allocation3], %s406
          %s408 = sand.u32 %s110, 1
          %s409 = smul.addr %s408, 16
          %s410 = scalar_lea.vmem [#allocation2], %s409
          %411 = dma.done %s407, 256
        $region44: #{tpu_custom_call.1} parent=39 // pred_fallthru
          _
      $region40: #{tpu_custom_call.1} parent=5 // pred_fallthru
        _
    $region6: #{tpu_custom_call.1} parent=1 // loop_footer
      %s16 = sadd.s32 1, %s12
    $region7: #{tpu_custom_call.1} parent=1 // loop_footer_branch
      %11 = sbr.rel target = $region3
    $region8: #{tpu_custom_call.1} parent=1 // loop_exit
      _
    %412 = vsyncpa [#allocation3], 1
    %s413 = scalar_lea.sflag [#allocation3], 1
    %414 = vsyncpa %s413, 1

</llo_original>
